<compile_context>
chip_gen: v5e
topology: v5e:2x2
jax: 0.10.0
libtpu: 0.0.40
codegen_flags: <defaults>
</compile_context>

<pallas_src>
import jax
import jax.numpy as jnp
from jax import lax
from jax.experimental import pallas as pl
from jax.experimental.pallas import tpu as pltpu

EPS = 1e-5  # nn.BatchNorm2d default


def conv_stats_kernel(x_ref, bmat_ref, sel_ref, o_ref, stats_ref):
    """Per batch element: 3x3 conv (as 3 banded matmuls) + per-channel sum/sumsq.

    x_ref:     (1, H+2, (W+2)*Cin)   padded input, channels folded into lanes
    bmat_ref:  (3, (W+2)*Cin, W*Cout) banded weight matrix per kernel row dy
    sel_ref:   (W*Cout, Cout)        0/1 selection matrix for per-channel sums
    o_ref:     (1, H, W*Cout)        pre-BN conv output (lane-dense)
    stats_ref: (1, 2, Cout)          row 0: per-channel sum, row 1: sum of squares
    """
    Hp = x_ref.shape[1]
    H = Hp - 2
    WC = o_ref.shape[2]  # W * Cout (lane-dense)

    # --- 3x3 conv: 3 MXU matmuls, kw*Cin folded into the contraction (K=72). ---
    acc = jnp.zeros((H, WC), jnp.float32)
    for dy in range(3):  # static, unrolled
        acc += jnp.dot(x_ref[0, dy:dy + H, :], bmat_ref[dy],
                       preferred_element_type=jnp.float32)

    o_ref[0] = acc  # unmasked, lane-dense store

    # --- single-pass BatchNorm partial stats (sum, sum of squares) ---
    col_sum = jnp.sum(acc, axis=0, keepdims=True)        # (1, W*Cout)
    col_sq = jnp.sum(acc * acc, axis=0, keepdims=True)   # (1, W*Cout)
    # Collapse the W replicas per channel with a tiny matmul (avoids reshapes).
    stats_ref[0] = jnp.dot(jnp.concatenate([col_sum, col_sq], axis=0),
                           sel_ref[...],
                           preferred_element_type=jnp.float32)  # (2, Cout)


def bn_relu_kernel(y_ref, scale_ref, shift_ref, o_ref):
    """Apply y*scale + shift (per-channel, pre-tiled to lane layout) then ReLU.

    y_ref: (1, H, W*Cout); scale_ref/shift_ref: (1, W*Cout); o_ref: (1, H, W*Cout)
    """
    y = y_ref[0] * scale_ref[...] + shift_ref[...]
    o_ref[0] = jnp.maximum(y, 0.0)


@jax.jit
def conv_block(x_nchw, w_oihw, bias, gamma, beta):
    """Forward pass of ConvBlock. x_nchw: (N, Cin, H, W); returns (N, Cout, H, W)."""
    N, Cin, H, W = x_nchw.shape
    Cout = w_oihw.shape[0]
    Hp, Wp = H + 2, W + 2
    WC = W * Cout

    # Conv bias is mathematically cancelled by training-mode BN mean subtraction.
    del bias

    # ---- input prep (layout plumbing only; see TODO(synk) above) ----
    x_nhwc = jnp.transpose(x_nchw, (0, 2, 3, 1)).astype(jnp.float32)
    x_pad = jnp.pad(x_nhwc, ((0, 0), (1, 1), (1, 1), (0, 0)))
    x2 = x_pad.reshape(N, Hp, Wp * Cin)

    # ---- banded weight matrices (wrapper-side, weight-sized, tiny) ----
    # bmat[dy, wp*Cin+ci, w*Cout+co] = K[dy, wp-w, ci, co] for 0 <= wp-w <= 2 else 0
    w_hwio = jnp.transpose(w_oihw, (2, 3, 1, 0)).astype(jnp.float32)  # (3,3,Cin,Cout)
    wp_i = jnp.arange(Wp)[None, :, None]
    w_i = jnp.arange(W)[None, None, :]
    dx_i = jnp.arange(3)[:, None, None]
    shift_onehot = (wp_i == w_i + dx_i).astype(jnp.float32)           # (3, Wp, W)
    bmat = jnp.einsum('xpw,yxio->ypiwo', shift_onehot, w_hwio)        # (3,Wp,Cin,W,Cout)
    bmat = bmat.reshape(3, Wp * Cin, WC)

    # Selection matrix: (W*Cout, Cout), row w*Cout+co -> e_co (sums W replicas).
    sel = jnp.tile(jnp.eye(Cout, dtype=jnp.float32), (W, 1))

    # ---- pass 1: conv + per-channel partial stats, gridded over N ----
    conv_out, stats = pl.pallas_call(
        conv_stats_kernel,
        grid=(N,),
        out_shape=(jax.ShapeDtypeStruct((N, H, WC), jnp.float32),
                   jax.ShapeDtypeStruct((N, 2, Cout), jnp.float32)),
        in_specs=[
            pl.BlockSpec((1, Hp, Wp * Cin), lambda n: (n, 0, 0)),
            pl.BlockSpec((3, Wp * Cin, WC), lambda n: (0, 0, 0)),
            pl.BlockSpec((WC, Cout), lambda n: (0, 0)),
        ],
        out_specs=(
            pl.BlockSpec((1, H, WC), lambda n: (n, 0, 0)),
            pl.BlockSpec((1, 2, Cout), lambda n: (n, 0, 0)),
        ),
        compiler_params=pltpu.CompilerParams(dimension_semantics=("parallel",)),
    )(x2, bmat, sel)

    # ---- finalize BN stats on (Cout,)-sized vectors (negligible XLA work) ----
    count = jnp.float32(N * H * W)
    ch_sum = jnp.sum(stats[:, 0, :], axis=0)
    ch_sq = jnp.sum(stats[:, 1, :], axis=0)
    mean = ch_sum / count
    var = ch_sq / count - mean * mean                       # biased (training-mode) var
    scale = gamma.astype(jnp.float32) * lax.rsqrt(var + EPS)
    shift_c = beta.astype(jnp.float32) - mean * scale
    scale_row = jnp.tile(scale, W).reshape(1, WC)           # lane layout: [w*Cout+co]
    shift_row = jnp.tile(shift_c, W).reshape(1, WC)

    # ---- pass 2: normalize + ReLU, lane-dense, gridded over N ----
    out2 = pl.pallas_call(
        bn_relu_kernel,
        grid=(N,),
        out_shape=jax.ShapeDtypeStruct((N, H, WC), jnp.float32),
        in_specs=[
            pl.BlockSpec((1, H, WC), lambda n: (n, 0, 0)),
            pl.BlockSpec((1, WC), lambda n: (0, 0)),
            pl.BlockSpec((1, WC), lambda n: (0, 0)),
        ],
        out_specs=pl.BlockSpec((1, H, WC), lambda n: (n, 0, 0)),
        compiler_params=pltpu.CompilerParams(dimension_semantics=("parallel",)),
    )(conv_out, scale_row, shift_row)

    out_nhwc = out2.reshape(N, H, W, Cout)
    return jnp.transpose(out_nhwc, (0, 3, 1, 2))  # back to NCHW


def conv_block_reference(x_nchw, w_oihw, bias, gamma, beta):
    """Pure-JAX reference matching PyTorch ConvBlock.forward (training-mode BN).

    Keeps the conv bias so the bias-cancellation claim is actually verified.
    """
    y = lax.conv_general_dilated(
        x_nchw.astype(jnp.float32), w_oihw.astype(jnp.float32),
        window_strides=(1, 1), padding=((1, 1), (1, 1)),
        dimension_numbers=("NCHW", "OIHW", "NCHW"))
    y = y + bias.reshape(1, -1, 1, 1)
    mean = jnp.mean(y, axis=(0, 2, 3), keepdims=True)
    var = jnp.mean((y - mean) ** 2, axis=(0, 2, 3), keepdims=True)
    y = (y - mean) * lax.rsqrt(var + EPS)
    y = y * gamma.reshape(1, -1, 1, 1) + beta.reshape(1, -1, 1, 1)
    return jnp.maximum(y, 0.0)


if __name__ == "__main__":
    # Small deterministic problem: N=2, Cin=4, Cout=8, H=W=16  (W*Cout = 128 lanes).
    N, Cin, Cout, H, W = 2, 4, 8, 16, 16
    key = jax.random.PRNGKey(0)
    kx, kw, kb, kg, kbe = jax.random.split(key, 5)

    x = jax.random.normal(kx, (N, Cin, H, W), jnp.float32)
    # Parameter shapes from ConvBlock.__init__ (Conv2d(in, out, 3, pad=1), BatchNorm2d(out)).
    w = jax.random.normal(kw, (Cout, Cin, 3, 3), jnp.float32) * 0.1   # conv.weight
    b = jax.random.normal(kb, (Cout,), jnp.float32) * 0.1             # conv.bias
    gamma = 1.0 + 0.1 * jax.random.normal(kg, (Cout,), jnp.float32)   # bn.weight
    beta = 0.1 * jax.random.normal(kbe, (Cout,), jnp.float32)         # bn.bias

    out = jax.block_until_ready(conv_block(x, w, b, gamma, beta))
    ref = jax.block_until_ready(conv_block_reference(x, w, b, gamma, beta))

    assert out.shape == (N, Cout, H, W)
    max_err = float(jnp.max(jnp.abs(out - ref)))
    assert max_err < 1e-4, f"max abs error {max_err}"

    print("KERNEL_OK")
</pallas_src>

<mosaic_0001>
module attributes {stable_mosaic.version = 11 : i64} {
  func.func @conv_stats_kernel(%arg0: i32, %arg1: memref<1x18x72xf32, #tpu.memory_space<vmem>>, %arg2: memref<3x72x128xf32, #tpu.memory_space<vmem>>, %arg3: memref<128x8xf32, #tpu.memory_space<vmem>>, %arg4: memref<1x16x128xf32, #tpu.memory_space<vmem>>, %arg5: memref<1x2x8xf32, #tpu.memory_space<vmem>>) attributes {dimension_semantics = [#tpu.dimension_semantics<parallel>], iteration_bounds = array<i64: 2>, scalar_prefetch = 0 : i64, scratch_operands = 0 : i64, tpu.core_type = #tpu.core_type<tc>, window_params = [{transform_indices = @transform_0, window_bounds = array<i64: 1, 18, 72>}, {pipeline_mode = #tpu.pipeline_mode<synchronous>, transform_indices = @transform_1, window_bounds = array<i64: 3, 72, 128>}, {pipeline_mode = #tpu.pipeline_mode<synchronous>, transform_indices = @transform_2, window_bounds = array<i64: 128, 8>}, {transform_indices = @transform_3, window_bounds = array<i64: 1, 16, 128>}, {transform_indices = @transform_4, window_bounds = array<i64: 1, 2, 8>}]} {
    %cst = arith.constant 0.000000e+00 : f32
    %0 = vector.broadcast %cst : f32 to vector<16x128xf32>
    %c0 = arith.constant 0 : index
    %c0_0 = arith.constant 0 : index
    %c0_1 = arith.constant 0 : index
    %1 = vector.load %arg1[%c0, %c0_0, %c0_1] : memref<1x18x72xf32, #tpu.memory_space<vmem>>, vector<1x16x72xf32>
    %2 = vector.shape_cast %1 : vector<1x16x72xf32> to vector<16x72xf32>
    %c0_2 = arith.constant 0 : index
    %c0_3 = arith.constant 0 : index
    %c0_4 = arith.constant 0 : index
    %3 = vector.load %arg2[%c0_2, %c0_3, %c0_4] : memref<3x72x128xf32, #tpu.memory_space<vmem>>, vector<1x72x128xf32>
    %4 = vector.shape_cast %3 : vector<1x72x128xf32> to vector<72x128xf32>
    %cst_5 = arith.constant dense<0.000000e+00> : vector<16x128xf32>
    %5 = tpu.matmul %2, %4, %cst_5 {dimension_numbers = #tpu.dot_dimension_numbers<[1], [0], [0], [1], [0, 0, 1, 1], [], []>} : vector<16x72xf32>, vector<72x128xf32>, vector<16x128xf32> -> vector<16x128xf32>
    %6 = arith.addf %0, %5 : vector<16x128xf32>
    %c0_6 = arith.constant 0 : index
    %c1 = arith.constant 1 : index
    %c0_7 = arith.constant 0 : index
    %7 = vector.load %arg1[%c0_6, %c1, %c0_7] : memref<1x18x72xf32, #tpu.memory_space<vmem>>, vector<1x16x72xf32>
    %8 = vector.shape_cast %7 : vector<1x16x72xf32> to vector<16x72xf32>
    %c1_8 = arith.constant 1 : index
    %c0_9 = arith.constant 0 : index
    %c0_10 = arith.constant 0 : index
    %9 = vector.load %arg2[%c1_8, %c0_9, %c0_10] : memref<3x72x128xf32, #tpu.memory_space<vmem>>, vector<1x72x128xf32>
    %10 = vector.shape_cast %9 : vector<1x72x128xf32> to vector<72x128xf32>
    %cst_11 = arith.constant dense<0.000000e+00> : vector<16x128xf32>
    %11 = tpu.matmul %8, %10, %cst_11 {dimension_numbers = #tpu.dot_dimension_numbers<[1], [0], [0], [1], [0, 0, 1, 1], [], []>} : vector<16x72xf32>, vector<72x128xf32>, vector<16x128xf32> -> vector<16x128xf32>
    %12 = arith.addf %6, %11 : vector<16x128xf32>
    %c0_12 = arith.constant 0 : index
    %c2 = arith.constant 2 : index
    %c0_13 = arith.constant 0 : index
    %13 = vector.load %arg1[%c0_12, %c2, %c0_13] : memref<1x18x72xf32, #tpu.memory_space<vmem>>, vector<1x16x72xf32>
    %14 = vector.shape_cast %13 : vector<1x16x72xf32> to vector<16x72xf32>
    %c2_14 = arith.constant 2 : index
    %c0_15 = arith.constant 0 : index
    %c0_16 = arith.constant 0 : index
    %15 = vector.load %arg2[%c2_14, %c0_15, %c0_16] : memref<3x72x128xf32, #tpu.memory_space<vmem>>, vector<1x72x128xf32>
    %16 = vector.shape_cast %15 : vector<1x72x128xf32> to vector<72x128xf32>
    %cst_17 = arith.constant dense<0.000000e+00> : vector<16x128xf32>
    %17 = tpu.matmul %14, %16, %cst_17 {dimension_numbers = #tpu.dot_dimension_numbers<[1], [0], [0], [1], [0, 0, 1, 1], [], []>} : vector<16x72xf32>, vector<72x128xf32>, vector<16x128xf32> -> vector<16x128xf32>
    %18 = arith.addf %12, %17 : vector<16x128xf32>
    %c0_18 = arith.constant 0 : index
    %c0_19 = arith.constant 0 : index
    %c0_20 = arith.constant 0 : index
    %19 = vector.load %arg4[%c0_18, %c0_19, %c0_20] : memref<1x16x128xf32, #tpu.memory_space<vmem>>, vector<1x16x128xf32>
    %20 = vector.shape_cast %19 : vector<1x16x128xf32> to vector<16x128xf32>
    %21 = vector.shape_cast %18 : vector<16x128xf32> to vector<1x16x128xf32>
    tpu.vector_store %arg4[%c0_18, %c0_19, %c0_20], %21 {strides = array<i32>} : memref<1x16x128xf32, #tpu.memory_space<vmem>>, vector<1x16x128xf32>,
    %cst_21 = arith.constant dense<0.000000e+00> : vector<128xf32>
    %22 = vector.multi_reduction <add>, %18, %cst_21 [0] : vector<16x128xf32> to vector<128xf32>
    %23 = vector.shape_cast %22 : vector<128xf32> to vector<1x128xf32>
    %24 = arith.mulf %18, %18 : vector<16x128xf32>
    %cst_22 = arith.constant dense<0.000000e+00> : vector<128xf32>
    %25 = vector.multi_reduction <add>, %24, %cst_22 [0] : vector<16x128xf32> to vector<128xf32>
    %26 = vector.shape_cast %25 : vector<128xf32> to vector<1x128xf32>
    %27 = tpu.concatenate %23, %26 in 0 : vector<1x128xf32>, vector<1x128xf32> -> vector<2x128xf32>
    %c0_23 = arith.constant 0 : index
    %c0_24 = arith.constant 0 : index
    %28 = vector.load %arg3[%c0_23, %c0_24] : memref<128x8xf32, #tpu.memory_space<vmem>>, vector<128x8xf32>
    %cst_25 = arith.constant dense<0.000000e+00> : vector<2x8xf32>
    %29 = tpu.matmul %27, %28, %cst_25 {dimension_numbers = #tpu.dot_dimension_numbers<[1], [0], [0], [1], [0, 0, 1, 1], [], []>} : vector<2x128xf32>, vector<128x8xf32>, vector<2x8xf32> -> vector<2x8xf32>
    %c0_26 = arith.constant 0 : index
    %c0_27 = arith.constant 0 : index
    %c0_28 = arith.constant 0 : index
    %30 = vector.load %arg5[%c0_26, %c0_27, %c0_28] : memref<1x2x8xf32, #tpu.memory_space<vmem>>, vector<1x2x8xf32>
    %31 = vector.shape_cast %30 : vector<1x2x8xf32> to vector<2x8xf32>
    %32 = vector.shape_cast %29 : vector<2x8xf32> to vector<1x2x8xf32>
    tpu.vector_store %arg5[%c0_26, %c0_27, %c0_28], %32 {strides = array<i32>} : memref<1x2x8xf32, #tpu.memory_space<vmem>>, vector<1x2x8xf32>,
    return
  }
  func.func @transform_0(%arg0: i32) -> (i32, i32, i32) {
    %c0_i32 = arith.constant 0 : i32
    %c0_i32_0 = arith.constant 0 : i32
    %c0_i32_1 = arith.constant 0 : i32
    return %arg0, %c0_i32, %c0_i32_0 : i32, i32, i32
  }
  func.func @transform_1(%arg0: i32) -> (i32, i32, i32) {
    %c0_i32 = arith.constant 0 : i32
    %c0_i32_0 = arith.constant 0 : i32
    %c0_i32_1 = arith.constant 0 : i32
    %c0_i32_2 = arith.constant 0 : i32
    return %c0_i32, %c0_i32_0, %c0_i32_1 : i32, i32, i32
  }
  func.func @transform_2(%arg0: i32) -> (i32, i32) {
    %c0_i32 = arith.constant 0 : i32
    %c0_i32_0 = arith.constant 0 : i32
    %c0_i32_1 = arith.constant 0 : i32
    return %c0_i32, %c0_i32_0 : i32, i32
  }
  func.func @transform_3(%arg0: i32) -> (i32, i32, i32) {
    %c0_i32 = arith.constant 0 : i32
    %c0_i32_0 = arith.constant 0 : i32
    %c0_i32_1 = arith.constant 0 : i32
    return %arg0, %c0_i32, %c0_i32_0 : i32, i32, i32
  }
  func.func @transform_4(%arg0: i32) -> (i32, i32, i32) {
    %c0_i32 = arith.constant 0 : i32
    %c0_i32_0 = arith.constant 0 : i32
    %c0_i32_1 = arith.constant 0 : i32
    return %arg0, %c0_i32, %c0_i32_0 : i32, i32, i32
  }
}

module attributes {stable_mosaic.version = 11 : i64} {
  func.func @bn_relu_kernel(%arg0: i32, %arg1: memref<1x16x128xf32, #tpu.memory_space<vmem>>, %arg2: memref<1x128xf32, #tpu.memory_space<vmem>>, %arg3: memref<1x128xf32, #tpu.memory_space<vmem>>, %arg4: memref<1x16x128xf32, #tpu.memory_space<vmem>>) attributes {dimension_semantics = [#tpu.dimension_semantics<parallel>], iteration_bounds = array<i64: 2>, scalar_prefetch = 0 : i64, scratch_operands = 0 : i64, tpu.core_type = #tpu.core_type<tc>, window_params = [{transform_indices = @transform_0, window_bounds = array<i64: 1, 16, 128>}, {pipeline_mode = #tpu.pipeline_mode<synchronous>, transform_indices = @transform_1, window_bounds = array<i64: 1, 128>}, {pipeline_mode = #tpu.pipeline_mode<synchronous>, transform_indices = @transform_2, window_bounds = array<i64: 1, 128>}, {transform_indices = @transform_3, window_bounds = array<i64: 1, 16, 128>}]} {
    %c0 = arith.constant 0 : index
    %c0_0 = arith.constant 0 : index
    %c0_1 = arith.constant 0 : index
    %0 = vector.load %arg1[%c0, %c0_0, %c0_1] : memref<1x16x128xf32, #tpu.memory_space<vmem>>, vector<1x16x128xf32>
    %1 = vector.shape_cast %0 : vector<1x16x128xf32> to vector<16x128xf32>
    %c0_2 = arith.constant 0 : index
    %c0_3 = arith.constant 0 : index
    %2 = vector.load %arg2[%c0_2, %c0_3] : memref<1x128xf32, #tpu.memory_space<vmem>>, vector<1x128xf32>
    %3 = vector.broadcast %2 : vector<1x128xf32> to vector<16x128xf32>
    %4 = arith.mulf %1, %3 : vector<16x128xf32>
    %c0_4 = arith.constant 0 : index
    %c0_5 = arith.constant 0 : index
    %5 = vector.load %arg3[%c0_4, %c0_5] : memref<1x128xf32, #tpu.memory_space<vmem>>, vector<1x128xf32>
    %6 = vector.broadcast %5 : vector<1x128xf32> to vector<16x128xf32>
    %7 = arith.addf %4, %6 : vector<16x128xf32>
    %cst = arith.constant 0.000000e+00 : f32
    %8 = vector.broadcast %cst : f32 to vector<16x128xf32>
    %9 = arith.maximumf %7, %8 : vector<16x128xf32>
    %c0_6 = arith.constant 0 : index
    %c0_7 = arith.constant 0 : index
    %c0_8 = arith.constant 0 : index
    %10 = vector.load %arg4[%c0_6, %c0_7, %c0_8] : memref<1x16x128xf32, #tpu.memory_space<vmem>>, vector<1x16x128xf32>
    %11 = vector.shape_cast %10 : vector<1x16x128xf32> to vector<16x128xf32>
    %12 = vector.shape_cast %9 : vector<16x128xf32> to vector<1x16x128xf32>
    tpu.vector_store %arg4[%c0_6, %c0_7, %c0_8], %12 {strides = array<i32>} : memref<1x16x128xf32, #tpu.memory_space<vmem>>, vector<1x16x128xf32>,
    return
  }
  func.func @transform_0(%arg0: i32) -> (i32, i32, i32) {
    %c0_i32 = arith.constant 0 : i32
    %c0_i32_0 = arith.constant 0 : i32
    %c0_i32_1 = arith.constant 0 : i32
    return %arg0, %c0_i32, %c0_i32_0 : i32, i32, i32
  }
  func.func @transform_1(%arg0: i32) -> (i32, i32) {
    %c0_i32 = arith.constant 0 : i32
    %c0_i32_0 = arith.constant 0 : i32
    %c0_i32_1 = arith.constant 0 : i32
    return %c0_i32, %c0_i32_0 : i32, i32
  }
  func.func @transform_2(%arg0: i32) -> (i32, i32) {
    %c0_i32 = arith.constant 0 : i32
    %c0_i32_0 = arith.constant 0 : i32
    %c0_i32_1 = arith.constant 0 : i32
    return %c0_i32, %c0_i32_0 : i32, i32
  }
  func.func @transform_3(%arg0: i32) -> (i32, i32, i32) {
    %c0_i32 = arith.constant 0 : i32
    %c0_i32_0 = arith.constant 0 : i32
    %c0_i32_1 = arith.constant 0 : i32
    return %arg0, %c0_i32, %c0_i32_0 : i32, i32, i32
  }
}

</mosaic_0001>

<llo_original>
// kernel: tile.23
$region0: #{tile.23}
  #allocation0 [shape = 's32[1]{0}', space=sflag, size = 0x4, scoped, tag = 'scoped memory for tile.23']
  %s0 = inlined_call_operand.vmem [shape: f32[8], index: 0, kind: input, shape index: {}]
  %s1 = inlined_call_operand.vmem [shape: f32[16,8], index: 1, kind: output, shape index: {}]
  // Predicated region
  $region2: #{tile.23} parent=0 // pred_check
    _
  $region3: #{tile.23} parent=0 // pred_check_branch
    %3 = sbr.rel (0) target = $region5
  $region4: #{tile.23} parent=0 // pred_region
    _
  $region5: #{tile.23} parent=0 // pred_fallthru
    _
  %v4 = vld [vmem:[%s0] ss:$0 sm:$0xff]
  %5 = vst [vmem:[%s1] sm:$0xff] %v4
  %s6 = scalar_lea.vmem %s1, 8
  %7 = vst [vmem:[%s6] sm:$0xff] %v4

// kernel: tile.24
$region0: #{tile.24}
  %s0 = inlined_call_operand.vmem [shape: f32[16,8], index: 0, kind: input, shape index: {}]
  %s1 = inlined_call_operand.vmem [shape: f32[1,128], index: 1, kind: output, shape index: {}]
  $region1: #{tile.24} parent=0
    #allocation0 [shape = 'u8[4096]{0}', space=vmem, size = 0x1000, scoped, tag = 'scoped mem for output reshape']
    %v2 = vld [vmem:[%s0] sm:$0x1]
    %vm3 = vcmask 64512
    %4 = vst.msk [vmem:[#allocation0] sm:$0x1] %vm3, %v2
    %s5 = scalar_lea.vmem %s0, 15
    %v6 = vld [vmem:[%s5] sm:$0x1]
    %7 = vrot.lane.b32.xlu0 %v6, 120
    %v8 = vpop.permute.xlu0 %7
    %vm9 = vcmask 1048512
    %10 = vst.msk [vmem:[#allocation0] sm:$0x1] %vm9, %v8
    %s11 = scalar_lea.vmem %s0, 14
    %v12 = vld [vmem:[%s11] sm:$0x1]
    %13 = vrot.lane.b32.xlu0 %v12, 112
    %v14 = vpop.permute.xlu0 %13
    %vm15 = vcmask 982912
    %16 = vst.msk [vmem:[#allocation0] sm:$0x1] %vm15, %v14
    %s17 = scalar_lea.vmem %s0, 13
    %v18 = vld [vmem:[%s17] sm:$0x1]
    %19 = vrot.lane.b32.xlu0 %v18, 104
    %v20 = vpop.permute.xlu0 %19
    %vm21 = vcmask 917312
    %22 = vst.msk [vmem:[#allocation0] sm:$0x1] %vm21, %v20
    %s23 = scalar_lea.vmem %s0, 12
    %v24 = vld [vmem:[%s23] sm:$0x1]
    %25 = vrot.lane.b32.xlu0 %v24, 96
    %v26 = vpop.permute.xlu0 %25
    %vm27 = vcmask 851712
    %28 = vst.msk [vmem:[#allocation0] sm:$0x1] %vm27, %v26
    %s29 = scalar_lea.vmem %s0, 11
    %v30 = vld [vmem:[%s29] sm:$0x1]
    %31 = vrot.lane.b32.xlu0 %v30, 88
    %v32 = vpop.permute.xlu0 %31
    %vm33 = vcmask 786112
    %34 = vst.msk [vmem:[#allocation0] sm:$0x1] %vm33, %v32
    %s35 = scalar_lea.vmem %s0, 10
    %v36 = vld [vmem:[%s35] sm:$0x1]
    %37 = vrot.lane.b32.xlu0 %v36, 80
    %v38 = vpop.permute.xlu0 %37
    %vm39 = vcmask 720512
    %40 = vst.msk [vmem:[#allocation0] sm:$0x1] %vm39, %v38
    %s41 = scalar_lea.vmem %s0, 9
    %v42 = vld [vmem:[%s41] sm:$0x1]
    %43 = vrot.lane.b32.xlu0 %v42, 72
    %v44 = vpop.permute.xlu0 %43
    %vm45 = vcmask 654912
    %46 = vst.msk [vmem:[#allocation0] sm:$0x1] %vm45, %v44
    %s47 = scalar_lea.vmem %s0, 8
    %v48 = vld [vmem:[%s47] sm:$0x1]
    %49 = vrot.lane.b32.xlu0 %v48, 64
    %v50 = vpop.permute.xlu0 %49
    %vm51 = vcmask 589312
    %52 = vst.msk [vmem:[#allocation0] sm:$0x1] %vm51, %v50
    %s53 = scalar_lea.vmem %s0, 7
    %v54 = vld [vmem:[%s53] sm:$0x1]
    %55 = vrot.lane.b32.xlu0 %v54, 56
    %v56 = vpop.permute.xlu0 %55
    %vm57 = vcmask 523712
    %58 = vst.msk [vmem:[#allocation0] sm:$0x1] %vm57, %v56
    %s59 = scalar_lea.vmem %s0, 6
    %v60 = vld [vmem:[%s59] sm:$0x1]
    %61 = vrot.lane.b32.xlu0 %v60, 48
    %v62 = vpop.permute.xlu0 %61
    %vm63 = vcmask 458112
    %64 = vst.msk [vmem:[#allocation0] sm:$0x1] %vm63, %v62
    %s65 = scalar_lea.vmem %s0, 5
    %v66 = vld [vmem:[%s65] sm:$0x1]
    %67 = vrot.lane.b32.xlu0 %v66, 40
    %v68 = vpop.permute.xlu0 %67
    %vm69 = vcmask 392512
    %70 = vst.msk [vmem:[#allocation0] sm:$0x1] %vm69, %v68
    %s71 = scalar_lea.vmem %s0, 4
    %v72 = vld [vmem:[%s71] sm:$0x1]
    %73 = vrot.lane.b32.xlu0 %v72, 32
    %v74 = vpop.permute.xlu0 %73
    %vm75 = vcmask 326912
    %76 = vst.msk [vmem:[#allocation0] sm:$0x1] %vm75, %v74
    %s77 = scalar_lea.vmem %s0, 3
    %v78 = vld [vmem:[%s77] sm:$0x1]
    %79 = vrot.lane.b32.xlu0 %v78, 24
    %v80 = vpop.permute.xlu0 %79
    %vm81 = vcmask 261312
    %82 = vst.msk [vmem:[#allocation0] sm:$0x1] %vm81, %v80
    %s83 = scalar_lea.vmem %s0, 2
    %v84 = vld [vmem:[%s83] sm:$0x1]
    %85 = vrot.lane.b32.xlu0 %v84, 16
    %v86 = vpop.permute.xlu0 %85
    %vm87 = vcmask 195712
    %88 = vst.msk [vmem:[#allocation0] sm:$0x1] %vm87, %v86
    %s89 = scalar_lea.vmem %s0, 1
    %v90 = vld [vmem:[%s89] sm:$0x1]
    %91 = vrot.lane.b32.xlu0 %v90, 8
    %v92 = vpop.permute.xlu0 %91
    %vm93 = vcmask 130112
    %94 = vst.msk [vmem:[#allocation0] sm:$0x1] %vm93, %v92
    %s96 = ssub.s32 2, 1
    %v97 = vld [vmem:[#allocation0] sm:%s96]
    %s99 = ssub.s32 2, 1
    %100 = vst [vmem:[%s1] sm:%s99] %v97

// kernel: conv_block.3
$region0: #{conv_block.3}
  #allocation0 [shape = 'u32[]', space=smem, size = 0x4, offset = 0x4, fixed_abs, tag = 'smem constant byte address 0x4 - core index']
  #allocation1 [shape = 'u32[72,128]{1,0:T(1,128)}', space=vmem, size = 0x9000, scoped, tag = 'internal scratch']
  %s0 = inlined_call_operand.vmem [shape: f32[2,16,128], index: 0, kind: input, shape index: {}]
  %s1 = inlined_call_operand.vmem [shape: f32[1,128], index: 1, kind: input, shape index: {}]
  %s2 = inlined_call_operand.vmem [shape: f32[1,128], index: 2, kind: input, shape index: {}]
  %s3 = inlined_call_operand.vmem [shape: f32[2,16,128], index: 3, kind: output, shape index: {}]
  %s4 = sld [smem:[#allocation0]]
  $region45: #{conv_block.3} parent=0
    _
  %s6 = ssub.s32 1, %s4
  %s7 = scalar_select 0, %s6, %s4
  loop: start=0, step=1, limit=4
  $region2: #{conv_block.3} parent=0 // loop_pre_header
    _
  $region3: #{conv_block.3} parent=0 // loop_header
    %s9 = sphi 0, %s13
    %p10 = scmp.ge.s32.totalorder %s9, 4
    %s19 = sphi 0, %s21
    %s22 = sphi 0, %s19
    %s23 = sphi 0, %s22
    %s39 = sphi 0, %s23
    %s43 = sphi 0, %s43
    %s45 = sphi 0, %s43
    %s46 = sphi 0, %s45
    %s60 = sphi 0, %s46
    %s64 = sphi 0, %s64
    %s66 = sphi 0, %s64
    %s67 = sphi 0, %s66
    %s81 = sphi 0, %s67
    %s87 = sphi 0, %s89
    %s90 = sphi 0, %s87
    %s91 = sphi 0, %s90
    %s107 = sphi 0, %s91
  $region4: #{conv_block.3} parent=0 // loop_header_branch
    %12 = sbr.rel (%p10) target = $region8
  $region5: #{conv_block.3} parent=0 // loop_body
    %s14 = ssub.s32 %s9, 1
    %s15 = ssub.s32 %s9, 2
    %s16 = sadd.s32 %s9, 1
    %s17 = ssub.s32 %s9, %s16
    %p18 = scmp.eq.s32.totalorder %s17, 0
    %s20 = sadd.s32 %s19, 1
    %s21 = scalar_select %p18, %s19, %s20
    %p24 = pneg %p18
    %p25 = scmp.eq.s32.totalorder %s9, 1
    %p26 = por %p24, %p25
    %p27 = scmp.ne.s32.totalorder %s19, %s22
    %p28 = scmp.eq.s32.totalorder %s9, 0
    %p29 = por %p27, %p28
    %p30 = scmp.ne.s32.totalorder %s19, %s22
    %p31 = scmp.eq.s32.totalorder %s14, 1
    %p32 = por %p30, %p31
    %p33 = scmp.ne.s32.totalorder %s22, %s23
    %p34 = scmp.eq.s32.totalorder %s14, 0
    %p35 = por %p33, %p34
    %p36 = scmp.ne.s32.totalorder %s22, %s23
    %p37 = scmp.eq.s32.totalorder %s15, 1
    %p38 = por %p36, %p37
    %p40 = scmp.ne.s32.totalorder %s23, %s39
    %p41 = scmp.eq.s32.totalorder %s15, 0
    %p42 = por %p40, %p41
    %s44 = sadd.s32 %s43, 1
    %p47 = scmp.eq.s32.totalorder %s9, 1
    %p48 = scmp.ne.s32.totalorder %s43, %s45
    %p49 = scmp.eq.s32.totalorder %s9, 0
    %p50 = por %p48, %p49
    %p51 = scmp.ne.s32.totalorder %s43, %s45
    %p52 = scmp.eq.s32.totalorder %s14, 1
    %p53 = por %p51, %p52
    %p54 = scmp.ne.s32.totalorder %s45, %s46
    %p55 = scmp.eq.s32.totalorder %s14, 0
    %p56 = por %p54, %p55
    %p57 = scmp.ne.s32.totalorder %s45, %s46
    %p58 = scmp.eq.s32.totalorder %s15, 1
    %p59 = por %p57, %p58
    %p61 = scmp.ne.s32.totalorder %s46, %s60
    %p62 = scmp.eq.s32.totalorder %s15, 0
    %p63 = por %p61, %p62
    %s65 = sadd.s32 %s64, 1
    %p68 = scmp.eq.s32.totalorder %s9, 1
    %p69 = scmp.ne.s32.totalorder %s64, %s66
    %p70 = scmp.eq.s32.totalorder %s9, 0
    %p71 = por %p69, %p70
    %p72 = scmp.ne.s32.totalorder %s64, %s66
    %p73 = scmp.eq.s32.totalorder %s14, 1
    %p74 = por %p72, %p73
    %p75 = scmp.ne.s32.totalorder %s66, %s67
    %p76 = scmp.eq.s32.totalorder %s14, 0
    %p77 = por %p75, %p76
    %p78 = scmp.ne.s32.totalorder %s66, %s67
    %p79 = scmp.eq.s32.totalorder %s15, 1
    %p80 = por %p78, %p79
    %p82 = scmp.ne.s32.totalorder %s67, %s81
    %p83 = scmp.eq.s32.totalorder %s15, 0
    %p84 = por %p82, %p83
    %s85 = ssub.s32 %s9, %s16
    %p86 = scmp.eq.s32.totalorder %s85, 0
    %s88 = sadd.s32 %s87, 1
    %s89 = scalar_select %p86, %s87, %s88
    %p92 = pneg %p86
    %p93 = scmp.eq.s32.totalorder %s9, 1
    %p94 = por %p92, %p93
    %p95 = scmp.ne.s32.totalorder %s87, %s90
    %p96 = scmp.eq.s32.totalorder %s9, 0
    %p97 = por %p95, %p96
    %p98 = scmp.ne.s32.totalorder %s87, %s90
    %p99 = scmp.eq.s32.totalorder %s14, 1
    %p100 = por %p98, %p99
    %p101 = scmp.ne.s32.totalorder %s90, %s91
    %p102 = scmp.eq.s32.totalorder %s14, 0
    %p103 = por %p101, %p102
    %p104 = scmp.ne.s32.totalorder %s90, %s91
    %p105 = scmp.eq.s32.totalorder %s15, 1
    %p106 = por %p104, %p105
    %p108 = scmp.ne.s32.totalorder %s91, %s107
    %p109 = scmp.eq.s32.totalorder %s15, 0
    %p110 = por %p108, %p109
    %p111 = scmp.le.s32.totalorder 1, %s9
    %p112 = scmp.lt.s32.totalorder %s9, 3
    %p113 = pnand %p111, %p112
    %p114 = pneg %p113
    // Predicated region
    $region9: #{conv_block.3} parent=5 // pred_check
      _
    $region10: #{conv_block.3} parent=5 // pred_check_branch
      %116 = sbr.rel (%p113) target = $region12
    $region11: #{conv_block.3} parent=5 // pred_region
      %s117 = ssub.s32 %s9, 1
      // Predicated region
      $region13: #{conv_block.3} parent=11 // pred_check
        %p118 = pneg %p56
      $region14: #{conv_block.3} parent=11 // pred_check_branch
        %120 = sbr.rel (%p118) target = $region16
      $region15: #{conv_block.3} parent=11 // pred_region
        _
      $region16: #{conv_block.3} parent=11 // pred_fallthru
        _
      // Predicated region
      $region17: #{conv_block.3} parent=11 // pred_check
        %p121 = pneg %p77
      $region18: #{conv_block.3} parent=11 // pred_check_branch
        %123 = sbr.rel (%p121) target = $region20
      $region19: #{conv_block.3} parent=11 // pred_region
        _
      $region20: #{conv_block.3} parent=11 // pred_fallthru
        _
    $region12: #{conv_block.3} parent=5 // pred_fallthru
      _
    %p124 = scmp.lt.s32.totalorder %s9, 2
    // Predicated region
    $region21: #{conv_block.3} parent=5 // pred_check
      %p125 = pneg %p124
    $region22: #{conv_block.3} parent=5 // pred_check_branch
      %127 = sbr.rel (%p125) target = $region24
    $region23: #{conv_block.3} parent=5 // pred_region
      // Predicated region
      $region25: #{conv_block.3} parent=23 // pred_check
        %p128 = pneg %p29
      $region26: #{conv_block.3} parent=23 // pred_check_branch
        %130 = sbr.rel (%p128) target = $region28
      $region27: #{conv_block.3} parent=23 // pred_region
        %p131 = scmp.lt.s32.totalorder %s9, 1
        %s132 = scalar_select %p131, %s9, 1
        %s133 = smul.addr %s132, 2
        %s134 = smul.addr %s133, 8
        %s135 = scalar_lea.vmem %s0, %s134
      $region28: #{conv_block.3} parent=23 // pred_fallthru
        _
    $region24: #{conv_block.3} parent=5 // pred_fallthru
      _
    %p136 = scmp.le.s32.totalorder 1, %s9
    %p137 = scmp.lt.s32.totalorder %s9, 3
    %p138 = pnand %p136, %p137
    %p139 = pneg %p138
    // Predicated region
    $region29: #{conv_block.3} parent=5 // pred_check
      _
    $region30: #{conv_block.3} parent=5 // pred_check_branch
      %141 = sbr.rel (%p138) target = $region32
    $region31: #{conv_block.3} parent=5 // pred_region
      %s142 = ssub.s32 %s9, 1
      %p143 = scmp.lt.s32.totalorder %s14, 1
      %s144 = scalar_select %p143, %s14, 1
      %s145 = smul.addr %s144, 2
      %s146 = smul.addr %s145, 8
      %s147 = scalar_lea.vmem %s0, %s146
      %p148 = pneg %p35
      %p149 = pneg %p32
      %p150 = pneg %p56
      %p151 = pneg %p53
      %p152 = pneg %p77
      %p153 = pneg %p74
      %p154 = pneg %p103
      %p155 = pneg %p100
      %p156 = scmp.lt.s32.totalorder %s14, 1
      %s157 = scalar_select %p156, %s14, 1
      %s158 = smul.addr %s157, 2
      %s159 = smul.addr %s158, 8
      %s160 = scalar_lea.vmem %s3, %s159
      %p161 = scmp.lt.s32.totalorder %s14, 1
      %s162 = scalar_select %p161, %s14, 1
      %s163 = smul.addr %s162, 2
      %s164 = smul.addr %s163, 8
      %s165 = scalar_lea.vmem %s0, %s164
      %p166 = scmp.lt.s32.totalorder %s14, 1
      %s167 = scalar_select %p166, %s14, 1
      %s168 = smul.addr %s167, 2
      %s169 = smul.addr %s168, 8
      %s170 = scalar_lea.vmem %s3, %s169
      %v171 = vld [vmem:[%s165] sm:$0xff]
      %v172 = vld [vmem:[%s165 + $0x8] sm:$0xff]
      %v173 = vld [vmem:[%s1] sm:$0x1]
      %v175 = vperm.slane %v173, 0
      %v177 = vmul.f32 %v171, %v175
      %v178 = vmul.f32 %v172, %v175
      %v179 = vld [vmem:[%s2] sm:$0x1]
      %v181 = vperm.slane %v179, 0
      %v183 = vadd.f32 %v177, %v181
      %v184 = vadd.f32 %v178, %v181
      %v185 = vmax.f32 %v183, 0.0
      %v186 = vmax.f32 %v184, 0.0
      %187 = vst [vmem:[%s170] sm:$0xff] %v185
      %188 = vst [vmem:[%s170 + $0x8] sm:$0xff] %v186
      %p189 = scmp.lt.s32.totalorder %s14, 1
      %s190 = scalar_select %p189, %s14, 1
      %s191 = smul.addr %s190, 2
      %s192 = smul.addr %s191, 8
      %s193 = scalar_lea.vmem %s3, %s192
      // Predicated region
      $region33: #{conv_block.3} parent=31 // pred_check
        %p194 = pneg %p100
      $region34: #{conv_block.3} parent=31 // pred_check_branch
        %196 = sbr.rel (%p194) target = $region36
      $region35: #{conv_block.3} parent=31 // pred_region
        _
      $region36: #{conv_block.3} parent=31 // pred_fallthru
        _
    $region32: #{conv_block.3} parent=5 // pred_fallthru
      _
    %p197 = scmp.le.s32.totalorder 2, %s9
    // Predicated region
    $region37: #{conv_block.3} parent=5 // pred_check
      %p198 = pneg %p197
    $region38: #{conv_block.3} parent=5 // pred_check_branch
      %200 = sbr.rel (%p198) target = $region40
    $region39: #{conv_block.3} parent=5 // pred_region
      %s201 = ssub.s32 %s9, 2
      // Predicated region
      $region41: #{conv_block.3} parent=39 // pred_check
        %p202 = pneg %p106
      $region42: #{conv_block.3} parent=39 // pred_check_branch
        %204 = sbr.rel (%p202) target = $region44
      $region43: #{conv_block.3} parent=39 // pred_region
        %p205 = scmp.lt.s32.totalorder %s15, 1
        %s206 = scalar_select %p205, %s15, 1
        %s207 = smul.addr %s206, 2
        %s208 = smul.addr %s207, 8
        %s209 = scalar_lea.vmem %s3, %s208
      $region44: #{conv_block.3} parent=39 // pred_fallthru
        _
    $region40: #{conv_block.3} parent=5 // pred_fallthru
      _
  $region6: #{conv_block.3} parent=0 // loop_footer
    %s13 = sadd.s32 1, %s9
  $region7: #{conv_block.3} parent=0 // loop_footer_branch
    %8 = sbr.rel target = $region3
  $region8: #{conv_block.3} parent=0 // loop_exit
    _

// kernel: conv_block.2
$region0: #{conv_block.2}
  #allocation0 [shape = 'u32[]', space=smem, size = 0x4, offset = 0x4, fixed_abs, tag = 'smem constant byte address 0x4 - core index']
  #allocation1 [shape = 'u32[72,128]{1,0:T(1,128)}', space=vmem, size = 0x9000, scoped, tag = 'internal scratch']
  %s0 = inlined_call_operand.vmem [shape: f32[2,18,72], index: 0, kind: input, shape index: {}]
  %s1 = inlined_call_operand.vmem [shape: f32[3,72,128], index: 1, kind: input, shape index: {}]
  %s2 = inlined_call_operand.vmem [shape: f32[128,8], index: 2, kind: input, shape index: {}]
  %s3 = inlined_call_operand.vmem [shape: f32[2,16,128], index: 3, kind: output, shape index: {0}]
  %s4 = inlined_call_operand.vmem [shape: f32[2,2,8], index: 4, kind: output, shape index: {1}]
  %5 = xla_tuple %s3, %s4
  %s6 = sld [smem:[#allocation0]]
  $region53: #{conv_block.2} parent=0
    _
  %s8 = ssub.s32 1, %s6
  %s9 = scalar_select 0, %s8, %s6
  loop: start=0, step=1, limit=4
  $region2: #{conv_block.2} parent=0 // loop_pre_header
    _
  $region3: #{conv_block.2} parent=0 // loop_header
    %s11 = sphi 0, %s15
    %p12 = scmp.ge.s32.totalorder %s11, 4
    %s21 = sphi 0, %s23
    %s24 = sphi 0, %s21
    %s25 = sphi 0, %s24
    %s41 = sphi 0, %s25
    %s45 = sphi 0, %s45
    %s47 = sphi 0, %s45
    %s48 = sphi 0, %s47
    %s62 = sphi 0, %s48
    %s66 = sphi 0, %s66
    %s68 = sphi 0, %s66
    %s69 = sphi 0, %s68
    %s83 = sphi 0, %s69
    %s89 = sphi 0, %s91
    %s92 = sphi 0, %s89
    %s93 = sphi 0, %s92
    %s109 = sphi 0, %s93
    %s115 = sphi 0, %s117
    %s118 = sphi 0, %s115
    %s119 = sphi 0, %s118
    %s135 = sphi 0, %s119
  $region4: #{conv_block.2} parent=0 // loop_header_branch
    %14 = sbr.rel (%p12) target = $region8
  $region5: #{conv_block.2} parent=0 // loop_body
    %s16 = ssub.s32 %s11, 1
    %s17 = ssub.s32 %s11, 2
    %s18 = sadd.s32 %s11, 1
    %s19 = ssub.s32 %s11, %s18
    %p20 = scmp.eq.s32.totalorder %s19, 0
    %s22 = sadd.s32 %s21, 1
    %s23 = scalar_select %p20, %s21, %s22
    %p26 = pneg %p20
    %p27 = scmp.eq.s32.totalorder %s11, 1
    %p28 = por %p26, %p27
    %p29 = scmp.ne.s32.totalorder %s21, %s24
    %p30 = scmp.eq.s32.totalorder %s11, 0
    %p31 = por %p29, %p30
    %p32 = scmp.ne.s32.totalorder %s21, %s24
    %p33 = scmp.eq.s32.totalorder %s16, 1
    %p34 = por %p32, %p33
    %p35 = scmp.ne.s32.totalorder %s24, %s25
    %p36 = scmp.eq.s32.totalorder %s16, 0
    %p37 = por %p35, %p36
    %p38 = scmp.ne.s32.totalorder %s24, %s25
    %p39 = scmp.eq.s32.totalorder %s17, 1
    %p40 = por %p38, %p39
    %p42 = scmp.ne.s32.totalorder %s25, %s41
    %p43 = scmp.eq.s32.totalorder %s17, 0
    %p44 = por %p42, %p43
    %s46 = sadd.s32 %s45, 1
    %p49 = scmp.eq.s32.totalorder %s11, 1
    %p50 = scmp.ne.s32.totalorder %s45, %s47
    %p51 = scmp.eq.s32.totalorder %s11, 0
    %p52 = por %p50, %p51
    %p53 = scmp.ne.s32.totalorder %s45, %s47
    %p54 = scmp.eq.s32.totalorder %s16, 1
    %p55 = por %p53, %p54
    %p56 = scmp.ne.s32.totalorder %s47, %s48
    %p57 = scmp.eq.s32.totalorder %s16, 0
    %p58 = por %p56, %p57
    %p59 = scmp.ne.s32.totalorder %s47, %s48
    %p60 = scmp.eq.s32.totalorder %s17, 1
    %p61 = por %p59, %p60
    %p63 = scmp.ne.s32.totalorder %s48, %s62
    %p64 = scmp.eq.s32.totalorder %s17, 0
    %p65 = por %p63, %p64
    %s67 = sadd.s32 %s66, 1
    %p70 = scmp.eq.s32.totalorder %s11, 1
    %p71 = scmp.ne.s32.totalorder %s66, %s68
    %p72 = scmp.eq.s32.totalorder %s11, 0
    %p73 = por %p71, %p72
    %p74 = scmp.ne.s32.totalorder %s66, %s68
    %p75 = scmp.eq.s32.totalorder %s16, 1
    %p76 = por %p74, %p75
    %p77 = scmp.ne.s32.totalorder %s68, %s69
    %p78 = scmp.eq.s32.totalorder %s16, 0
    %p79 = por %p77, %p78
    %p80 = scmp.ne.s32.totalorder %s68, %s69
    %p81 = scmp.eq.s32.totalorder %s17, 1
    %p82 = por %p80, %p81
    %p84 = scmp.ne.s32.totalorder %s69, %s83
    %p85 = scmp.eq.s32.totalorder %s17, 0
    %p86 = por %p84, %p85
    %s87 = ssub.s32 %s11, %s18
    %p88 = scmp.eq.s32.totalorder %s87, 0
    %s90 = sadd.s32 %s89, 1
    %s91 = scalar_select %p88, %s89, %s90
    %p94 = pneg %p88
    %p95 = scmp.eq.s32.totalorder %s11, 1
    %p96 = por %p94, %p95
    %p97 = scmp.ne.s32.totalorder %s89, %s92
    %p98 = scmp.eq.s32.totalorder %s11, 0
    %p99 = por %p97, %p98
    %p100 = scmp.ne.s32.totalorder %s89, %s92
    %p101 = scmp.eq.s32.totalorder %s16, 1
    %p102 = por %p100, %p101
    %p103 = scmp.ne.s32.totalorder %s92, %s93
    %p104 = scmp.eq.s32.totalorder %s16, 0
    %p105 = por %p103, %p104
    %p106 = scmp.ne.s32.totalorder %s92, %s93
    %p107 = scmp.eq.s32.totalorder %s17, 1
    %p108 = por %p106, %p107
    %p110 = scmp.ne.s32.totalorder %s93, %s109
    %p111 = scmp.eq.s32.totalorder %s17, 0
    %p112 = por %p110, %p111
    %s113 = ssub.s32 %s11, %s18
    %p114 = scmp.eq.s32.totalorder %s113, 0
    %s116 = sadd.s32 %s115, 1
    %s117 = scalar_select %p114, %s115, %s116
    %p120 = pneg %p114
    %p121 = scmp.eq.s32.totalorder %s11, 1
    %p122 = por %p120, %p121
    %p123 = scmp.ne.s32.totalorder %s115, %s118
    %p124 = scmp.eq.s32.totalorder %s11, 0
    %p125 = por %p123, %p124
    %p126 = scmp.ne.s32.totalorder %s115, %s118
    %p127 = scmp.eq.s32.totalorder %s16, 1
    %p128 = por %p126, %p127
    %p129 = scmp.ne.s32.totalorder %s118, %s119
    %p130 = scmp.eq.s32.totalorder %s16, 0
    %p131 = por %p129, %p130
    %p132 = scmp.ne.s32.totalorder %s118, %s119
    %p133 = scmp.eq.s32.totalorder %s17, 1
    %p134 = por %p132, %p133
    %p136 = scmp.ne.s32.totalorder %s119, %s135
    %p137 = scmp.eq.s32.totalorder %s17, 0
    %p138 = por %p136, %p137
    %p139 = scmp.le.s32.totalorder 1, %s11
    %p140 = scmp.lt.s32.totalorder %s11, 3
    %p141 = pnand %p139, %p140
    %p142 = pneg %p141
    // Predicated region
    $region9: #{conv_block.2} parent=5 // pred_check
      _
    $region10: #{conv_block.2} parent=5 // pred_check_branch
      %144 = sbr.rel (%p141) target = $region12
    $region11: #{conv_block.2} parent=5 // pred_region
      %s145 = ssub.s32 %s11, 1
      // Predicated region
      $region13: #{conv_block.2} parent=11 // pred_check
        %p146 = pneg %p58
      $region14: #{conv_block.2} parent=11 // pred_check_branch
        %148 = sbr.rel (%p146) target = $region16
      $region15: #{conv_block.2} parent=11 // pred_region
        _
      $region16: #{conv_block.2} parent=11 // pred_fallthru
        _
      // Predicated region
      $region17: #{conv_block.2} parent=11 // pred_check
        %p149 = pneg %p79
      $region18: #{conv_block.2} parent=11 // pred_check_branch
        %151 = sbr.rel (%p149) target = $region20
      $region19: #{conv_block.2} parent=11 // pred_region
        _
      $region20: #{conv_block.2} parent=11 // pred_fallthru
        _
    $region12: #{conv_block.2} parent=5 // pred_fallthru
      _
    %p152 = scmp.lt.s32.totalorder %s11, 2
    // Predicated region
    $region21: #{conv_block.2} parent=5 // pred_check
      %p153 = pneg %p152
    $region22: #{conv_block.2} parent=5 // pred_check_branch
      %155 = sbr.rel (%p153) target = $region24
    $region23: #{conv_block.2} parent=5 // pred_region
      // Predicated region
      $region25: #{conv_block.2} parent=23 // pred_check
        %p156 = pneg %p31
      $region26: #{conv_block.2} parent=23 // pred_check_branch
        %158 = sbr.rel (%p156) target = $region28
      $region27: #{conv_block.2} parent=23 // pred_region
        %p159 = scmp.lt.s32.totalorder %s11, 1
        %s160 = scalar_select %p159, %s11, 1
        %s161 = smul.addr %s160, 3
        %s162 = smul.addr %s161, 8
        %s163 = scalar_lea.vmem %s0, %s162
      $region28: #{conv_block.2} parent=23 // pred_fallthru
        _
    $region24: #{conv_block.2} parent=5 // pred_fallthru
      _
    %p164 = scmp.le.s32.totalorder 1, %s11
    %p165 = scmp.lt.s32.totalorder %s11, 3
    %p166 = pnand %p164, %p165
    %p167 = pneg %p166
    // Predicated region
    $region29: #{conv_block.2} parent=5 // pred_check
      _
    $region30: #{conv_block.2} parent=5 // pred_check_branch
      %169 = sbr.rel (%p166) target = $region32
    $region31: #{conv_block.2} parent=5 // pred_region
      %s170 = ssub.s32 %s11, 1
      %p171 = scmp.lt.s32.totalorder %s16, 1
      %s172 = scalar_select %p171, %s16, 1
      %s173 = smul.addr %s172, 3
      %s174 = smul.addr %s173, 8
      %s175 = scalar_lea.vmem %s0, %s174
      %p176 = pneg %p37
      %p177 = pneg %p34
      %p178 = pneg %p58
      %p179 = pneg %p55
      %p180 = pneg %p79
      %p181 = pneg %p76
      %p182 = pneg %p105
      %p183 = pneg %p102
      %p184 = scmp.lt.s32.totalorder %s16, 1
      %s185 = scalar_select %p184, %s16, 1
      %s186 = smul.addr %s185, 2
      %s187 = smul.addr %s186, 8
      %s188 = scalar_lea.vmem %s3, %s187
      %p189 = pneg %p131
      %p190 = pneg %p128
      %p191 = scmp.lt.s32.totalorder %s16, 1
      %s192 = scalar_select %p191, %s16, 1
      %s193 = smul.addr %s192, 2
      %s194 = scalar_lea.vmem %s4, %s193
      %p195 = scmp.lt.s32.totalorder %s16, 1
      %s196 = scalar_select %p195, %s16, 1
      %s197 = smul.addr %s196, 3
      %s198 = smul.addr %s197, 8
      %s199 = scalar_lea.vmem %s0, %s198
      %p200 = scmp.lt.s32.totalorder %s16, 1
      %s201 = scalar_select %p200, %s16, 1
      %s202 = smul.addr %s201, 2
      %s203 = smul.addr %s202, 8
      %s204 = scalar_lea.vmem %s3, %s203
      %p205 = scmp.lt.s32.totalorder %s16, 1
      %s206 = scalar_select %p205, %s16, 1
      %s207 = smul.addr %s206, 2
      %s208 = scalar_lea.vmem %s4, %s207
      %v209 = vld [vmem:[%s199] sm:$0xff]
      %v210 = vld [vmem:[%s199 + $0x8] sm:$0xff]
      %v211 = vld [vmem:[%s1] sm:$0xff]
      %v212 = vld [vmem:[%s1 + $0x8] sm:$0xff]
      %v213 = vld [vmem:[%s1 + $0x10] sm:$0xff]
      %v214 = vld [vmem:[%s1 + $0x18] sm:$0xff]
      %v215 = vld [vmem:[%s1 + $0x20] sm:$0xff]
      %v216 = vld [vmem:[%s1 + $0x28] sm:$0xff]
      %v217 = vld [vmem:[%s1 + $0x30] sm:$0xff]
      %v218 = vld [vmem:[%s1 + $0x38] sm:$0xff]
      %v219 = vld [vmem:[%s1 + $0x40] sm:$0xff]
      %v220 = vld [vmem:[%s199 + $0x1] sm:$0xff]
      %v221 = vld [vmem:[%s199 + $0x9] sm:$0xff]
      %s222 = scalar_lea.vmem %s1, 72
      %v223 = vld [vmem:[%s222] sm:$0xff]
      %v224 = vld [vmem:[%s222 + $0x8] sm:$0xff]
      %v225 = vld [vmem:[%s222 + $0x10] sm:$0xff]
      %v226 = vld [vmem:[%s222 + $0x18] sm:$0xff]
      %v227 = vld [vmem:[%s222 + $0x20] sm:$0xff]
      %v228 = vld [vmem:[%s222 + $0x28] sm:$0xff]
      %v229 = vld [vmem:[%s222 + $0x30] sm:$0xff]
      %v230 = vld [vmem:[%s222 + $0x38] sm:$0xff]
      %v231 = vld [vmem:[%s222 + $0x40] sm:$0xff]
      %vm232 = vcmask 588800
      %v234 = vsel %vm232, %v220, 0
      %v237 = vsel %vm232, %v221, 0
      %239 = vmatpush.msra.mxu0 0.0
      %240 = vmatpush.msra.mxu0 0.0
      %241 = vmatpush.msra.mxu0 0.0
      %242 = vmatpush.msra.mxu0 0.0
      %243 = vmatpush.msra.mxu0 0.0
      %244 = vmatpush.msra.mxu0 0.0
      %245 = vmatpush.msra.mxu0 0.0
      %246 = vmatpush.msra.mxu0 %v231
      %247 = vmatpush.msra.mxu0 %v230
      %248 = vmatpush.msra.mxu0 %v229
      %249 = vmatpush.msra.mxu0 %v228
      %250 = vmatpush.msra.mxu0 %v227
      %251 = vmatpush.msra.mxu0 %v226
      %252 = vmatpush.msra.mxu0 %v225
      %253 = vmatpush.msra.mxu0 %v224
      %254 = vmatpush.msra.mxu0 %v223
      %255 = vmatmul.f32.gmra.mxu0 %v234
      %v256 = vpop.f32.mrf.mxu0
      %v257 = vadd.f32 0.0, %v256
      %258 = vmatmul.f32.gmra.mxu0 %v237
      %v259 = vpop.f32.mrf.mxu0
      %v260 = vadd.f32 0.0, %v259
      %261 = vdwg.mxu0
      %v263 = vsel %vm232, %v209, 0
      %v266 = vsel %vm232, %v210, 0
      %268 = vmatpush.msra.mxu0 0.0
      %269 = vmatpush.msra.mxu0 0.0
      %270 = vmatpush.msra.mxu0 0.0
      %271 = vmatpush.msra.mxu0 0.0
      %272 = vmatpush.msra.mxu0 0.0
      %273 = vmatpush.msra.mxu0 0.0
      %274 = vmatpush.msra.mxu0 0.0
      %275 = vmatpush.msra.mxu0 %v219
      %276 = vmatpush.msra.mxu0 %v218
      %277 = vmatpush.msra.mxu0 %v217
      %278 = vmatpush.msra.mxu0 %v216
      %279 = vmatpush.msra.mxu0 %v215
      %280 = vmatpush.msra.mxu0 %v214
      %281 = vmatpush.msra.mxu0 %v213
      %282 = vmatpush.msra.mxu0 %v212
      %283 = vmatpush.msra.mxu0 %v211
      %284 = vmatmul.f32.gmra.mxu0 %v263
      %v285 = vpop.f32.mrf.mxu0
      %v286 = vadd.f32 %v257, %v285
      %287 = vmatmul.f32.gmra.mxu0 %v266
      %v288 = vpop.f32.mrf.mxu0
      %v289 = vadd.f32 %v260, %v288
      %290 = vdwg.mxu0
      %v291 = vld [vmem:[%s199 + $0x2] sm:$0xff]
      %v292 = vld [vmem:[%s199 + $0xa] sm:$0xff]
      %s293 = scalar_lea.vmem %s1, 144
      %v294 = vld [vmem:[%s293] sm:$0xff]
      %v295 = vld [vmem:[%s293 + $0x8] sm:$0xff]
      %v296 = vld [vmem:[%s293 + $0x10] sm:$0xff]
      %v297 = vld [vmem:[%s293 + $0x18] sm:$0xff]
      %v298 = vld [vmem:[%s293 + $0x20] sm:$0xff]
      %v299 = vld [vmem:[%s293 + $0x28] sm:$0xff]
      %v300 = vld [vmem:[%s293 + $0x30] sm:$0xff]
      %v301 = vld [vmem:[%s293 + $0x38] sm:$0xff]
      %v302 = vld [vmem:[%s293 + $0x40] sm:$0xff]
      %v304 = vsel %vm232, %v291, 0
      %v307 = vsel %vm232, %v292, 0
      %309 = vmatpush.msra.mxu0 0.0
      %310 = vmatpush.msra.mxu0 0.0
      %311 = vmatpush.msra.mxu0 0.0
      %312 = vmatpush.msra.mxu0 0.0
      %313 = vmatpush.msra.mxu0 0.0
      %314 = vmatpush.msra.mxu0 0.0
      %315 = vmatpush.msra.mxu0 0.0
      %316 = vmatpush.msra.mxu0 %v302
      %317 = vmatpush.msra.mxu0 %v301
      %318 = vmatpush.msra.mxu0 %v300
      %319 = vmatpush.msra.mxu0 %v299
      %320 = vmatpush.msra.mxu0 %v298
      %321 = vmatpush.msra.mxu0 %v297
      %322 = vmatpush.msra.mxu0 %v296
      %323 = vmatpush.msra.mxu0 %v295
      %324 = vmatpush.msra.mxu0 %v294
      %325 = vmatmul.f32.gmra.mxu0 %v304
      %v326 = vpop.f32.mrf.mxu0
      %v327 = vadd.f32 0.0, %v326
      %328 = vmatmul.f32.gmra.mxu0 %v307
      %v329 = vpop.f32.mrf.mxu0
      %v330 = vadd.f32 0.0, %v329
      %331 = vdwg.mxu0
      %v332 = vadd.f32 %v286, %v327
      %v333 = vadd.f32 %v289, %v330
      %334 = vst [vmem:[%s204] sm:$0xff] %v332
      %335 = vst [vmem:[%s204 + $0x8] sm:$0xff] %v333
      %v336 = vadd.f32 %v332, %v333
      %v337 = vrot.slane %v336, 4
      %v338 = vadd.f32 %v336, %v337
      %v339 = vrot.slane %v338, 2
      %v340 = vadd.f32 %v338, %v339
      %v341 = vrot.slane %v340, 1
      %v342 = vadd.f32 %v340, %v341
      %v343 = vmul.f32 %v332, %v332
      %v344 = vmul.f32 %v333, %v333
      %v345 = vadd.f32 %v343, %v344
      %v346 = vrot.slane %v345, 4
      %v347 = vadd.f32 %v345, %v346
      %v348 = vrot.slane %v347, 2
      %v349 = vadd.f32 %v347, %v348
      %v350 = vrot.slane %v349, 1
      %v351 = vadd.f32 %v349, %v350
      %vm352 = vcmask 1040384
      %v353 = vsel %vm352, %v342, %v351
      %v354 = vld [vmem:[%s2] sm:$0xff]
      %v355 = vld [vmem:[%s2 + $0x8] sm:$0xff]
      %v356 = vld [vmem:[%s2 + $0x10] sm:$0xff]
      %v357 = vld [vmem:[%s2 + $0x18] sm:$0xff]
      %v358 = vld [vmem:[%s2 + $0x20] sm:$0xff]
      %v359 = vld [vmem:[%s2 + $0x28] sm:$0xff]
      %v360 = vld [vmem:[%s2 + $0x30] sm:$0xff]
      %v361 = vld [vmem:[%s2 + $0x38] sm:$0xff]
      %v362 = vld [vmem:[%s2 + $0x40] sm:$0xff]
      %v363 = vld [vmem:[%s2 + $0x48] sm:$0xff]
      %v364 = vld [vmem:[%s2 + $0x50] sm:$0xff]
      %v365 = vld [vmem:[%s2 + $0x58] sm:$0xff]
      %v366 = vld [vmem:[%s2 + $0x60] sm:$0xff]
      %v367 = vld [vmem:[%s2 + $0x68] sm:$0xff]
      %v368 = vld [vmem:[%s2 + $0x70] sm:$0xff]
      %v369 = vld [vmem:[%s2 + $0x78] sm:$0xff]
      %370 = vmatpush.msra.mxu0 %v369
      %371 = vmatpush.msra.mxu0 %v368
      %372 = vmatpush.msra.mxu0 %v367
      %373 = vmatpush.msra.mxu0 %v366
      %374 = vmatpush.msra.mxu0 %v365
      %375 = vmatpush.msra.mxu0 %v364
      %376 = vmatpush.msra.mxu0 %v363
      %377 = vmatpush.msra.mxu0 %v362
      %378 = vmatpush.msra.mxu0 %v361
      %379 = vmatpush.msra.mxu0 %v360
      %380 = vmatpush.msra.mxu0 %v359
      %381 = vmatpush.msra.mxu0 %v358
      %382 = vmatpush.msra.mxu0 %v357
      %383 = vmatpush.msra.mxu0 %v356
      %384 = vmatpush.msra.mxu0 %v355
      %385 = vmatpush.msra.mxu0 %v354
      %386 = vmatmul.f32.gmra.mxu0 %v353
      %v387 = vpop.f32.mrf.mxu0
      %v388 = vadd.f32 0.0, %v387
      %389 = vdwg.mxu0
      %vm390 = vcmask 58368
      %391 = vst.msk [vmem:[%s208] sm:$0x3] %vm390, %v388
      %p392 = scmp.lt.s32.totalorder %s16, 1
      %s393 = scalar_select %p392, %s16, 1
      %s394 = smul.addr %s393, 2
      %s395 = smul.addr %s394, 8
      %s396 = scalar_lea.vmem %s3, %s395
      %p397 = scmp.lt.s32.totalorder %s16, 1
      %s398 = scalar_select %p397, %s16, 1
      %s399 = smul.addr %s398, 2
      %s400 = scalar_lea.vmem %s4, %s399
      // Predicated region
      $region33: #{conv_block.2} parent=31 // pred_check
        %p401 = pneg %p102
      $region34: #{conv_block.2} parent=31 // pred_check_branch
        %403 = sbr.rel (%p401) target = $region36
      $region35: #{conv_block.2} parent=31 // pred_region
        _
      $region36: #{conv_block.2} parent=31 // pred_fallthru
        _
      // Predicated region
      $region37: #{conv_block.2} parent=31 // pred_check
        %p404 = pneg %p128
      $region38: #{conv_block.2} parent=31 // pred_check_branch
        %406 = sbr.rel (%p404) target = $region40
      $region39: #{conv_block.2} parent=31 // pred_region
        _
      $region40: #{conv_block.2} parent=31 // pred_fallthru
        _
    $region32: #{conv_block.2} parent=5 // pred_fallthru
      _
    %p407 = scmp.le.s32.totalorder 2, %s11
    // Predicated region
    $region41: #{conv_block.2} parent=5 // pred_check
      %p408 = pneg %p407
    $region42: #{conv_block.2} parent=5 // pred_check_branch
      %410 = sbr.rel (%p408) target = $region44
    $region43: #{conv_block.2} parent=5 // pred_region
      %s411 = ssub.s32 %s11, 2
      // Predicated region
      $region45: #{conv_block.2} parent=43 // pred_check
        %p412 = pneg %p108
      $region46: #{conv_block.2} parent=43 // pred_check_branch
        %414 = sbr.rel (%p412) target = $region48
      $region47: #{conv_block.2} parent=43 // pred_region
        %p415 = scmp.lt.s32.totalorder %s17, 1
        %s416 = scalar_select %p415, %s17, 1
        %s417 = smul.addr %s416, 2
        %s418 = smul.addr %s417, 8
        %s419 = scalar_lea.vmem %s3, %s418
      $region48: #{conv_block.2} parent=43 // pred_fallthru
        _
      // Predicated region
      $region49: #{conv_block.2} parent=43 // pred_check
        %p420 = pneg %p134
      $region50: #{conv_block.2} parent=43 // pred_check_branch
        %422 = sbr.rel (%p420) target = $region52
      $region51: #{conv_block.2} parent=43 // pred_region
        %p423 = scmp.lt.s32.totalorder %s17, 1
        %s424 = scalar_select %p423, %s17, 1
        %s425 = smul.addr %s424, 2
        %s426 = scalar_lea.vmem %s4, %s425
      $region52: #{conv_block.2} parent=43 // pred_fallthru
        _
    $region44: #{conv_block.2} parent=5 // pred_fallthru
      _
  $region6: #{conv_block.2} parent=0 // loop_footer
    %s15 = sadd.s32 1, %s11
  $region7: #{conv_block.2} parent=0 // loop_footer_branch
    %10 = sbr.rel target = $region3
  $region8: #{conv_block.2} parent=0 // loop_exit
    _

</llo_original>
